<compile_context>
chip_gen: v6e
topology: v6e:2x2x1
jax: 0.10.0
libtpu: 0.0.40
codegen_flags: <defaults>
</compile_context>

<pallas_src>
import functools

import jax
import jax.numpy as jnp
from jax.experimental import pallas as pl
from jax.experimental.pallas import tpu as pltpu


_LN_EPS = 1e-5


# ----------------------------------------------------------------------------
# Kernel
# ----------------------------------------------------------------------------
def _gate_add_norm_kernel(x_ref, res_ref, w_ref, p_ref, o_ref, *, fused):
    # x_ref/res_ref: (tile_n, D)
    # w_ref:  fused -> (D, 2D) = [W1^T | W2^T];  split -> (2, D, D)
    # p_ref:  (4, 1, D) stacked [b1, b2, gamma, beta] (f32)
    x = x_ref[...]
    d = x_ref.shape[-1]

    if fused:
        # Single MXU pipeline fill/drain; split at the 128-aligned boundary.
        z = jnp.dot(x, w_ref[...], preferred_element_type=jnp.float32)
        z1 = z[:, :d] + p_ref[0]
        z2 = z[:, d:] + p_ref[1]
    else:
        # D < 128 (or not 128-aligned): two dots avoid unaligned lane slices.
        z1 = jnp.dot(x, w_ref[0], preferred_element_type=jnp.float32) + p_ref[0]
        z2 = jnp.dot(x, w_ref[1], preferred_element_type=jnp.float32) + p_ref[1]

    # GLU + residual, all accumulation in f32.
    y = jax.nn.sigmoid(z1) * z2 + res_ref[...].astype(jnp.float32)

    # LayerNorm over last dim: biased variance, eps=1e-5, affine.
    mean = jnp.mean(y, axis=-1, keepdims=True)
    ctr = y - mean
    var = jnp.mean(ctr * ctr, axis=-1, keepdims=True)
    yn = ctr * jax.lax.rsqrt(var + _LN_EPS)

    o_ref[...] = (yn * p_ref[2] + p_ref[3]).astype(o_ref.dtype)


# ----------------------------------------------------------------------------
# Tile / VMEM heuristics
# ----------------------------------------------------------------------------
def _sublane_min_rows(itemsize):
    # 8 rows for f32, 16 for bf16, 32 for int8/fp8 (sublane packing minimum).
    return (8 * 4) // itemsize


def _vmem_budget_bytes():
    try:
        cap = int(pltpu.get_tpu_info().vmem_capacity_bytes)
    except Exception:
        cap = 64 << 20                      # assume the smallest (v7x per-TC)
    if cap >= (128 << 20):
        return 96 << 20                     # v5e / v6e: 128 MiB physical VMEM
    return 44 << 20                         # v7x: 64 MiB/TC, leave Mosaic headroom


def _vmem_footprint(rows, d, act_itemsize, w_itemsize):
    stream = 2 * 3 * rows * d * act_itemsize     # double-buffered x, res, out
    interm = 3 * rows * d * 4                    # f32 z1/z2 (or z), y, ctr temps
    params = 2 * d * d * w_itemsize + 4 * d * 4  # stacked weights + vectors
    return stream + interm + params


def _choose_tile_n(n_rows, d, act_itemsize, w_itemsize, budget_bytes):
    """Row tile: byte-capped (~8 MiB x+res+out per step), VMEM-safe (including
    f32 intermediates), and keeping >= 8 grid steps when the problem allows."""
    min_rows = _sublane_min_rows(act_itemsize)
    tile_bytes_target = 8 << 20          # amortize the ~0.35 us per-step cost
    min_grid_steps = 8                   # >= 4 steps per TensorCore on v7x

    t = min_rows
    while True:
        if t >= n_rows:                  # one tile already covers the problem
            break
        nxt = t * 2
        if _vmem_footprint(nxt, d, act_itemsize, w_itemsize) > budget_bytes:
            break
        step_bytes = 3 * t * d * act_itemsize
        if step_bytes >= tile_bytes_target:
            break
        # Stop shrinking the grid below min_grid_steps once tiles are >= 1 MiB.
        if nxt * min_grid_steps > n_rows and step_bytes >= (1 << 20):
            break
        t = nxt
    return t


# ----------------------------------------------------------------------------
# Parameter packing (do this once per layer; keep it off the per-call hot path)
# ----------------------------------------------------------------------------
def prepare_gate_add_norm_params(w1, b1, w2, b2, gamma, beta, *, weight_dtype):
    """w1/w2 are PyTorch nn.Linear weights, shape (out, in) = (D, D)."""
    d = w1.shape[0]
    fused = (d % 128 == 0)
    w1t = jnp.transpose(w1).astype(weight_dtype)        # (in, out)
    w2t = jnp.transpose(w2).astype(weight_dtype)
    if fused:
        w_pack = jnp.concatenate([w1t, w2t], axis=1)     # (D, 2D)
    else:
        w_pack = jnp.stack([w1t, w2t])                   # (2, D, D)
    p_pack = jnp.stack([b1, b2, gamma, beta]).astype(jnp.float32).reshape(4, 1, d)
    return w_pack, p_pack, fused


# ----------------------------------------------------------------------------
# Wrapper
# ----------------------------------------------------------------------------
def gate_add_norm(x, residual, w1, b1, w2, b2, gamma, beta, *,
                  tile_n=None, weight_dtype=None):
    """x, residual: (B, T, D)."""
    B, T, D = x.shape
    N = B * T
    act_itemsize = x.dtype.itemsize

    if residual is None:                       # optional residual in the module
        residual = jnp.zeros_like(x)

    # Feed the MXU in the activation dtype (bf16 callers hit the bf16 fast
    # path — critical on v5e); f32 callers keep full-precision weights.
    if weight_dtype is None:
        weight_dtype = x.dtype
    w_itemsize = jnp.dtype(weight_dtype).itemsize

    w_pack, p_pack, fused = prepare_gate_add_norm_params(
        w1, b1, w2, b2, gamma, beta, weight_dtype=weight_dtype)

    budget = _vmem_budget_bytes()
    min_rows = _sublane_min_rows(act_itemsize)
    if tile_n is None:
        tile_n = _choose_tile_n(N, D, act_itemsize, w_itemsize, budget)
    assert tile_n % min_rows == 0, (
        f"tile_n={tile_n} must be a multiple of the sublane minimum {min_rows} "
        f"for dtype {x.dtype}")

    n_blocks = pl.cdiv(N, tile_n)

    # Free reshapes (row-major views); no pad, no output slice.
    x2 = x.reshape(N, D)
    r2 = residual.reshape(N, D)

    kernel = functools.partial(_gate_add_norm_kernel, fused=fused)

    cost = pl.CostEstimate(
        flops=int(4 * N * D * D + 10 * N * D),
        transcendentals=int(N * D + N),
        bytes_accessed=int(3 * N * D * act_itemsize
                           + 2 * D * D * w_itemsize + 4 * D * 4),
    )

    w_zero_idx = (0,) * w_pack.ndim

    def build_call(single_buffer_params):
        param_kw = {"pipeline_mode": pl.Buffered(1)} if single_buffer_params else {}
        in_specs = [
            pl.BlockSpec((tile_n, D), lambda i: (i, 0)),               # x tile
            pl.BlockSpec((tile_n, D), lambda i: (i, 0)),               # res tile
            pl.BlockSpec(w_pack.shape, lambda i: w_zero_idx, **param_kw),
            pl.BlockSpec(p_pack.shape, lambda i: (0, 0, 0), **param_kw),
        ]
        return pl.pallas_call(
            kernel,
            out_shape=jax.ShapeDtypeStruct((N, D), x.dtype),
            grid_spec=pltpu.PrefetchScalarGridSpec(
                num_scalar_prefetch=0,
                grid=(n_blocks,),
                in_specs=in_specs,
                out_specs=pl.BlockSpec((tile_n, D), lambda i: (i, 0)),
            ),
            compiler_params=pltpu.CompilerParams(
                dimension_semantics=("parallel",),
                vmem_limit_bytes=int(budget),
            ),
            cost_estimate=cost,
        )

    try:
        out2 = build_call(True)(x2, r2, w_pack, p_pack)
    except Exception:
        # Fallback if this lowering rejects single-buffered constant inputs;
        # only costs the duplicated parameter buffer in VMEM.
        out2 = build_call(False)(x2, r2, w_pack, p_pack)

    return out2.reshape(B, T, D)


# ----------------------------------------------------------------------------
# Pure-JAX reference mirroring the PyTorch forward
# ----------------------------------------------------------------------------
def _reference(x, residual, w1, b1, w2, b2, gamma, beta):
    hi = jax.lax.Precision.HIGHEST
    sig = jax.nn.sigmoid(jnp.dot(x, w1.T, precision=hi) + b1)
    lin = jnp.dot(x, w2.T, precision=hi) + b2
    y = sig * lin + residual
    mean = jnp.mean(y, axis=-1, keepdims=True)
    var = jnp.mean((y - mean) ** 2, axis=-1, keepdims=True)
    yn = (y - mean) / jnp.sqrt(var + _LN_EPS)
    return yn * gamma + beta


if __name__ == "__main__":
    D = 32
    key = jax.random.PRNGKey(0)
    kx, kr, kw1, kb1, kw2, kb2 = jax.random.split(key, 6)

    # Deterministic parameter init (shapes from nn.Linear(D, D) / nn.LayerNorm(D)).
    bound = 1.0 / (D ** 0.5)
    w1 = jax.random.uniform(kw1, (D, D), minval=-bound, maxval=bound, dtype=jnp.float32)
    b1 = jax.random.uniform(kb1, (D,), minval=-bound, maxval=bound, dtype=jnp.float32)
    w2 = jax.random.uniform(kw2, (D, D), minval=-bound, maxval=bound, dtype=jnp.float32)
    b2 = jax.random.uniform(kb2, (D,), minval=-bound, maxval=bound, dtype=jnp.float32)
    gamma = jnp.ones((D,), dtype=jnp.float32)
    beta = jnp.zeros((D,), dtype=jnp.float32)

    # Case 1: tile-aligned row count.
    B, T = 2, 8
    x = jax.random.normal(kx, (B, T, D), dtype=jnp.float32)
    residual = jax.random.normal(kr, (B, T, D), dtype=jnp.float32)
    out = jax.block_until_ready(gate_add_norm(x, residual, w1, b1, w2, b2, gamma, beta))
    ref = _reference(x, residual, w1, b1, w2, b2, gamma, beta)
    assert out.shape == (B, T, D)
    assert jnp.allclose(out, ref, atol=1e-4, rtol=1e-4), \
        f"max err {jnp.max(jnp.abs(out - ref))}"

    # Case 2: non-tile-aligned row count (exercises the padless partial last block).
    B2, T2 = 3, 5
    x2 = jax.random.normal(kx, (B2, T2, D), dtype=jnp.float32)
    r2 = jax.random.normal(kr, (B2, T2, D), dtype=jnp.float32)
    out2 = jax.block_until_ready(gate_add_norm(x2, r2, w1, b1, w2, b2, gamma, beta))
    ref2 = _reference(x2, r2, w1, b1, w2, b2, gamma, beta)
    assert out2.shape == (B2, T2, D)
    assert jnp.allclose(out2, ref2, atol=1e-4, rtol=1e-4), \
        f"max err {jnp.max(jnp.abs(out2 - ref2))}"

    print("KERNEL_OK")
</pallas_src>

<mosaic_0001>
module attributes {stable_mosaic.version = 11 : i64} {
  func.func @_gate_add_norm_kernel(%arg0: i32, %arg1: memref<16x32xf32, #tpu.memory_space<vmem>>, %arg2: memref<16x32xf32, #tpu.memory_space<vmem>>, %arg3: memref<2x32x32xf32, #tpu.memory_space<vmem>>, %arg4: memref<4x1x32xf32, #tpu.memory_space<vmem>>, %arg5: memref<16x32xf32, #tpu.memory_space<vmem>>) attributes {dimension_semantics = [#tpu.dimension_semantics<parallel>], iteration_bounds = array<i64: 1>, scalar_prefetch = 0 : i64, scratch_operands = 0 : i64, tpu.core_type = #tpu.core_type<tc>, window_params = [{transform_indices = @transform_0, window_bounds = array<i64: 16, 32>}, {transform_indices = @transform_1, window_bounds = array<i64: 16, 32>}, {pipeline_mode = #tpu.pipeline_mode<synchronous>, transform_indices = @transform_2, window_bounds = array<i64: 2, 32, 32>}, {pipeline_mode = #tpu.pipeline_mode<synchronous>, transform_indices = @transform_3, window_bounds = array<i64: 4, 1, 32>}, {transform_indices = @transform_4, window_bounds = array<i64: 16, 32>}]} {
    %c0 = arith.constant 0 : index
    %c0_0 = arith.constant 0 : index
    %0 = vector.load %arg1[%c0, %c0_0] : memref<16x32xf32, #tpu.memory_space<vmem>>, vector<16x32xf32>
    %c0_1 = arith.constant 0 : index
    %c0_2 = arith.constant 0 : index
    %c0_3 = arith.constant 0 : index
    %1 = vector.load %arg3[%c0_1, %c0_2, %c0_3] : memref<2x32x32xf32, #tpu.memory_space<vmem>>, vector<1x32x32xf32>
    %2 = vector.shape_cast %1 : vector<1x32x32xf32> to vector<32x32xf32>
    %cst = arith.constant dense<0.000000e+00> : vector<16x32xf32>
    %3 = tpu.matmul %0, %2, %cst {dimension_numbers = #tpu.dot_dimension_numbers<[1], [0], [0], [1], [0, 0, 1, 1], [], []>} : vector<16x32xf32>, vector<32x32xf32>, vector<16x32xf32> -> vector<16x32xf32>
    %c0_4 = arith.constant 0 : index
    %c0_5 = arith.constant 0 : index
    %c0_6 = arith.constant 0 : index
    %4 = vector.load %arg4[%c0_4, %c0_5, %c0_6] : memref<4x1x32xf32, #tpu.memory_space<vmem>>, vector<1x1x32xf32>
    %5 = vector.shape_cast %4 : vector<1x1x32xf32> to vector<1x32xf32>
    %6 = vector.broadcast %5 : vector<1x32xf32> to vector<16x32xf32>
    %7 = arith.addf %3, %6 : vector<16x32xf32>
    %c1 = arith.constant 1 : index
    %c0_7 = arith.constant 0 : index
    %c0_8 = arith.constant 0 : index
    %8 = vector.load %arg3[%c1, %c0_7, %c0_8] : memref<2x32x32xf32, #tpu.memory_space<vmem>>, vector<1x32x32xf32>
    %9 = vector.shape_cast %8 : vector<1x32x32xf32> to vector<32x32xf32>
    %cst_9 = arith.constant dense<0.000000e+00> : vector<16x32xf32>
    %10 = tpu.matmul %0, %9, %cst_9 {dimension_numbers = #tpu.dot_dimension_numbers<[1], [0], [0], [1], [0, 0, 1, 1], [], []>} : vector<16x32xf32>, vector<32x32xf32>, vector<16x32xf32> -> vector<16x32xf32>
    %c1_10 = arith.constant 1 : index
    %c0_11 = arith.constant 0 : index
    %c0_12 = arith.constant 0 : index
    %11 = vector.load %arg4[%c1_10, %c0_11, %c0_12] : memref<4x1x32xf32, #tpu.memory_space<vmem>>, vector<1x1x32xf32>
    %12 = vector.shape_cast %11 : vector<1x1x32xf32> to vector<1x32xf32>
    %13 = vector.broadcast %12 : vector<1x32xf32> to vector<16x32xf32>
    %14 = arith.addf %10, %13 : vector<16x32xf32>
    %15 = arith.negf %7 : vector<16x32xf32>
    %16 = math.exp %15 : vector<16x32xf32>
    %cst_13 = arith.constant 1.000000e+00 : f32
    %17 = vector.broadcast %cst_13 : f32 to vector<16x32xf32>
    %18 = arith.addf %17, %16 : vector<16x32xf32>
    %19 = arith.divf %17, %18 : vector<16x32xf32>
    %20 = arith.mulf %19, %14 : vector<16x32xf32>
    %c0_14 = arith.constant 0 : index
    %c0_15 = arith.constant 0 : index
    %21 = vector.load %arg2[%c0_14, %c0_15] : memref<16x32xf32, #tpu.memory_space<vmem>>, vector<16x32xf32>
    %22 = arith.addf %20, %21 : vector<16x32xf32>
    %cst_16 = arith.constant dense<0.000000e+00> : vector<16xf32>
    %23 = vector.multi_reduction <add>, %22, %cst_16 [1] : vector<16x32xf32> to vector<16xf32>
    %24 = vector.shape_cast %23 : vector<16xf32> to vector<16x1xf32>
    %cst_17 = arith.constant 3.200000e+01 : f32
    %25 = vector.broadcast %cst_17 : f32 to vector<16x1xf32>
    %26 = arith.divf %24, %25 : vector<16x1xf32>
    %27 = vector.broadcast %26 : vector<16x1xf32> to vector<16x32xf32>
    %28 = arith.subf %22, %27 : vector<16x32xf32>
    %29 = arith.mulf %28, %28 : vector<16x32xf32>
    %cst_18 = arith.constant dense<0.000000e+00> : vector<16xf32>
    %30 = vector.multi_reduction <add>, %29, %cst_18 [1] : vector<16x32xf32> to vector<16xf32>
    %31 = vector.shape_cast %30 : vector<16xf32> to vector<16x1xf32>
    %cst_19 = arith.constant 3.200000e+01 : f32
    %32 = vector.broadcast %cst_19 : f32 to vector<16x1xf32>
    %33 = arith.divf %31, %32 : vector<16x1xf32>
    %cst_20 = arith.constant 9.99999974E-6 : f32
    %34 = vector.broadcast %cst_20 : f32 to vector<16x1xf32>
    %35 = arith.addf %33, %34 : vector<16x1xf32>
    %36 = math.rsqrt %35 : vector<16x1xf32>
    %37 = vector.broadcast %36 : vector<16x1xf32> to vector<16x32xf32>
    %38 = arith.mulf %28, %37 : vector<16x32xf32>
    %c2 = arith.constant 2 : index
    %c0_21 = arith.constant 0 : index
    %c0_22 = arith.constant 0 : index
    %39 = vector.load %arg4[%c2, %c0_21, %c0_22] : memref<4x1x32xf32, #tpu.memory_space<vmem>>, vector<1x1x32xf32>
    %40 = vector.shape_cast %39 : vector<1x1x32xf32> to vector<1x32xf32>
    %41 = vector.broadcast %40 : vector<1x32xf32> to vector<16x32xf32>
    %42 = arith.mulf %38, %41 : vector<16x32xf32>
    %c3 = arith.constant 3 : index
    %c0_23 = arith.constant 0 : index
    %c0_24 = arith.constant 0 : index
    %43 = vector.load %arg4[%c3, %c0_23, %c0_24] : memref<4x1x32xf32, #tpu.memory_space<vmem>>, vector<1x1x32xf32>
    %44 = vector.shape_cast %43 : vector<1x1x32xf32> to vector<1x32xf32>
    %45 = vector.broadcast %44 : vector<1x32xf32> to vector<16x32xf32>
    %46 = arith.addf %42, %45 : vector<16x32xf32>
    %c0_25 = arith.constant 0 : index
    %c0_26 = arith.constant 0 : index
    %47 = vector.load %arg5[%c0_25, %c0_26] : memref<16x32xf32, #tpu.memory_space<vmem>>, vector<16x32xf32>
    tpu.vector_store %arg5[%c0_25, %c0_26], %46 {strides = array<i32>} : memref<16x32xf32, #tpu.memory_space<vmem>>, vector<16x32xf32>,
    return
  }
  func.func @transform_0(%arg0: i32) -> (i32, i32) {
    %c0_i32 = arith.constant 0 : i32
    %c0_i32_0 = arith.constant 0 : i32
    return %arg0, %c0_i32 : i32, i32
  }
  func.func @transform_1(%arg0: i32) -> (i32, i32) {
    %c0_i32 = arith.constant 0 : i32
    %c0_i32_0 = arith.constant 0 : i32
    return %arg0, %c0_i32 : i32, i32
  }
  func.func @transform_2(%arg0: i32) -> (i32, i32, i32) {
    %c0_i32 = arith.constant 0 : i32
    %c0_i32_0 = arith.constant 0 : i32
    %c0_i32_1 = arith.constant 0 : i32
    %c0_i32_2 = arith.constant 0 : i32
    return %c0_i32, %c0_i32_0, %c0_i32_1 : i32, i32, i32
  }
  func.func @transform_3(%arg0: i32) -> (i32, i32, i32) {
    %c0_i32 = arith.constant 0 : i32
    %c0_i32_0 = arith.constant 0 : i32
    %c0_i32_1 = arith.constant 0 : i32
    %c0_i32_2 = arith.constant 0 : i32
    return %c0_i32, %c0_i32_0, %c0_i32_1 : i32, i32, i32
  }
  func.func @transform_4(%arg0: i32) -> (i32, i32) {
    %c0_i32 = arith.constant 0 : i32
    %c0_i32_0 = arith.constant 0 : i32
    return %arg0, %c0_i32 : i32, i32
  }
}

module attributes {stable_mosaic.version = 11 : i64} {
  func.func @_gate_add_norm_kernel(%arg0: i32, %arg1: memref<16x32xf32, #tpu.memory_space<vmem>>, %arg2: memref<16x32xf32, #tpu.memory_space<vmem>>, %arg3: memref<2x32x32xf32, #tpu.memory_space<vmem>>, %arg4: memref<4x1x32xf32, #tpu.memory_space<vmem>>, %arg5: memref<16x32xf32, #tpu.memory_space<vmem>>) attributes {dimension_semantics = [#tpu.dimension_semantics<parallel>], iteration_bounds = array<i64: 1>, scalar_prefetch = 0 : i64, scratch_operands = 0 : i64, tpu.core_type = #tpu.core_type<tc>, window_params = [{transform_indices = @transform_0, window_bounds = array<i64: 16, 32>}, {transform_indices = @transform_1, window_bounds = array<i64: 16, 32>}, {pipeline_mode = #tpu.pipeline_mode<synchronous>, transform_indices = @transform_2, window_bounds = array<i64: 2, 32, 32>}, {pipeline_mode = #tpu.pipeline_mode<synchronous>, transform_indices = @transform_3, window_bounds = array<i64: 4, 1, 32>}, {transform_indices = @transform_4, window_bounds = array<i64: 16, 32>}]} {
    %c0 = arith.constant 0 : index
    %c0_0 = arith.constant 0 : index
    %0 = vector.load %arg1[%c0, %c0_0] : memref<16x32xf32, #tpu.memory_space<vmem>>, vector<16x32xf32>
    %c0_1 = arith.constant 0 : index
    %c0_2 = arith.constant 0 : index
    %c0_3 = arith.constant 0 : index
    %1 = vector.load %arg3[%c0_1, %c0_2, %c0_3] : memref<2x32x32xf32, #tpu.memory_space<vmem>>, vector<1x32x32xf32>
    %2 = vector.shape_cast %1 : vector<1x32x32xf32> to vector<32x32xf32>
    %cst = arith.constant dense<0.000000e+00> : vector<16x32xf32>
    %3 = tpu.matmul %0, %2, %cst {dimension_numbers = #tpu.dot_dimension_numbers<[1], [0], [0], [1], [0, 0, 1, 1], [], []>} : vector<16x32xf32>, vector<32x32xf32>, vector<16x32xf32> -> vector<16x32xf32>
    %c0_4 = arith.constant 0 : index
    %c0_5 = arith.constant 0 : index
    %c0_6 = arith.constant 0 : index
    %4 = vector.load %arg4[%c0_4, %c0_5, %c0_6] : memref<4x1x32xf32, #tpu.memory_space<vmem>>, vector<1x1x32xf32>
    %5 = vector.shape_cast %4 : vector<1x1x32xf32> to vector<1x32xf32>
    %6 = vector.broadcast %5 : vector<1x32xf32> to vector<16x32xf32>
    %7 = arith.addf %3, %6 : vector<16x32xf32>
    %c1 = arith.constant 1 : index
    %c0_7 = arith.constant 0 : index
    %c0_8 = arith.constant 0 : index
    %8 = vector.load %arg3[%c1, %c0_7, %c0_8] : memref<2x32x32xf32, #tpu.memory_space<vmem>>, vector<1x32x32xf32>
    %9 = vector.shape_cast %8 : vector<1x32x32xf32> to vector<32x32xf32>
    %cst_9 = arith.constant dense<0.000000e+00> : vector<16x32xf32>
    %10 = tpu.matmul %0, %9, %cst_9 {dimension_numbers = #tpu.dot_dimension_numbers<[1], [0], [0], [1], [0, 0, 1, 1], [], []>} : vector<16x32xf32>, vector<32x32xf32>, vector<16x32xf32> -> vector<16x32xf32>
    %c1_10 = arith.constant 1 : index
    %c0_11 = arith.constant 0 : index
    %c0_12 = arith.constant 0 : index
    %11 = vector.load %arg4[%c1_10, %c0_11, %c0_12] : memref<4x1x32xf32, #tpu.memory_space<vmem>>, vector<1x1x32xf32>
    %12 = vector.shape_cast %11 : vector<1x1x32xf32> to vector<1x32xf32>
    %13 = vector.broadcast %12 : vector<1x32xf32> to vector<16x32xf32>
    %14 = arith.addf %10, %13 : vector<16x32xf32>
    %15 = arith.negf %7 : vector<16x32xf32>
    %16 = math.exp %15 : vector<16x32xf32>
    %cst_13 = arith.constant 1.000000e+00 : f32
    %17 = vector.broadcast %cst_13 : f32 to vector<16x32xf32>
    %18 = arith.addf %17, %16 : vector<16x32xf32>
    %19 = arith.divf %17, %18 : vector<16x32xf32>
    %20 = arith.mulf %19, %14 : vector<16x32xf32>
    %c0_14 = arith.constant 0 : index
    %c0_15 = arith.constant 0 : index
    %21 = vector.load %arg2[%c0_14, %c0_15] : memref<16x32xf32, #tpu.memory_space<vmem>>, vector<16x32xf32>
    %22 = arith.addf %20, %21 : vector<16x32xf32>
    %cst_16 = arith.constant dense<0.000000e+00> : vector<16xf32>
    %23 = vector.multi_reduction <add>, %22, %cst_16 [1] : vector<16x32xf32> to vector<16xf32>
    %24 = vector.shape_cast %23 : vector<16xf32> to vector<16x1xf32>
    %cst_17 = arith.constant 3.200000e+01 : f32
    %25 = vector.broadcast %cst_17 : f32 to vector<16x1xf32>
    %26 = arith.divf %24, %25 : vector<16x1xf32>
    %27 = vector.broadcast %26 : vector<16x1xf32> to vector<16x32xf32>
    %28 = arith.subf %22, %27 : vector<16x32xf32>
    %29 = arith.mulf %28, %28 : vector<16x32xf32>
    %cst_18 = arith.constant dense<0.000000e+00> : vector<16xf32>
    %30 = vector.multi_reduction <add>, %29, %cst_18 [1] : vector<16x32xf32> to vector<16xf32>
    %31 = vector.shape_cast %30 : vector<16xf32> to vector<16x1xf32>
    %cst_19 = arith.constant 3.200000e+01 : f32
    %32 = vector.broadcast %cst_19 : f32 to vector<16x1xf32>
    %33 = arith.divf %31, %32 : vector<16x1xf32>
    %cst_20 = arith.constant 9.99999974E-6 : f32
    %34 = vector.broadcast %cst_20 : f32 to vector<16x1xf32>
    %35 = arith.addf %33, %34 : vector<16x1xf32>
    %36 = math.rsqrt %35 : vector<16x1xf32>
    %37 = vector.broadcast %36 : vector<16x1xf32> to vector<16x32xf32>
    %38 = arith.mulf %28, %37 : vector<16x32xf32>
    %c2 = arith.constant 2 : index
    %c0_21 = arith.constant 0 : index
    %c0_22 = arith.constant 0 : index
    %39 = vector.load %arg4[%c2, %c0_21, %c0_22] : memref<4x1x32xf32, #tpu.memory_space<vmem>>, vector<1x1x32xf32>
    %40 = vector.shape_cast %39 : vector<1x1x32xf32> to vector<1x32xf32>
    %41 = vector.broadcast %40 : vector<1x32xf32> to vector<16x32xf32>
    %42 = arith.mulf %38, %41 : vector<16x32xf32>
    %c3 = arith.constant 3 : index
    %c0_23 = arith.constant 0 : index
    %c0_24 = arith.constant 0 : index
    %43 = vector.load %arg4[%c3, %c0_23, %c0_24] : memref<4x1x32xf32, #tpu.memory_space<vmem>>, vector<1x1x32xf32>
    %44 = vector.shape_cast %43 : vector<1x1x32xf32> to vector<1x32xf32>
    %45 = vector.broadcast %44 : vector<1x32xf32> to vector<16x32xf32>
    %46 = arith.addf %42, %45 : vector<16x32xf32>
    %c0_25 = arith.constant 0 : index
    %c0_26 = arith.constant 0 : index
    %47 = vector.load %arg5[%c0_25, %c0_26] : memref<16x32xf32, #tpu.memory_space<vmem>>, vector<16x32xf32>
    tpu.vector_store %arg5[%c0_25, %c0_26], %46 {strides = array<i32>} : memref<16x32xf32, #tpu.memory_space<vmem>>, vector<16x32xf32>,
    return
  }
  func.func @transform_0(%arg0: i32) -> (i32, i32) {
    %c0_i32 = arith.constant 0 : i32
    %c0_i32_0 = arith.constant 0 : i32
    return %arg0, %c0_i32 : i32, i32
  }
  func.func @transform_1(%arg0: i32) -> (i32, i32) {
    %c0_i32 = arith.constant 0 : i32
    %c0_i32_0 = arith.constant 0 : i32
    return %arg0, %c0_i32 : i32, i32
  }
  func.func @transform_2(%arg0: i32) -> (i32, i32, i32) {
    %c0_i32 = arith.constant 0 : i32
    %c0_i32_0 = arith.constant 0 : i32
    %c0_i32_1 = arith.constant 0 : i32
    %c0_i32_2 = arith.constant 0 : i32
    return %c0_i32, %c0_i32_0, %c0_i32_1 : i32, i32, i32
  }
  func.func @transform_3(%arg0: i32) -> (i32, i32, i32) {
    %c0_i32 = arith.constant 0 : i32
    %c0_i32_0 = arith.constant 0 : i32
    %c0_i32_1 = arith.constant 0 : i32
    %c0_i32_2 = arith.constant 0 : i32
    return %c0_i32, %c0_i32_0, %c0_i32_1 : i32, i32, i32
  }
  func.func @transform_4(%arg0: i32) -> (i32, i32) {
    %c0_i32 = arith.constant 0 : i32
    %c0_i32_0 = arith.constant 0 : i32
    return %arg0, %c0_i32 : i32, i32
  }
}

</mosaic_0001>

<llo_original>
// kernel: tpu_custom_call.1
$region0: #{tpu_custom_call.1}
  #allocation0 [shape = 'u32[]', space=smem, size = 0x4, offset = 0x4, fixed_abs, tag = 'smem constant byte address 0x4 - core index']
  #allocation1 [shape = 'u32[144,128]{1,0:T(1,128)}', space=vmem, size = 0x12000, scoped, tag = 'internal scratch']
  %s0 = inlined_call_operand.hbm [shape: f32[16,32], index: 0, kind: input, shape index: {}]
  %s1 = inlined_call_operand.hbm [shape: f32[16,32], index: 1, kind: input, shape index: {}]
  %s2 = inlined_call_operand.hbm [shape: f32[2,32,32], index: 2, kind: input, shape index: {}]
  %s3 = inlined_call_operand.vmem [shape: f32[4,1,32], index: 3, kind: input, shape index: {}]
  %s4 = inlined_call_operand.hbm [shape: f32[16,32], index: 4, kind: output, shape index: {}]
  %s5 = sld [smem:[#allocation0]]
  $region38: #{tpu_custom_call.1} parent=0
    _
  %s7 = ssub.s32 1, %s5
  %s8 = scalar_select 0, %s7, %s5
  $region1: #{tpu_custom_call.1} parent=0
    #allocation2 [shape = 'u8[8192]{0}', space=vmem, size = 0x2000, scoped, tag = 'input window, operand 0, single buffered']
    #allocation3 [shape = 's32[1]{0}', space=sflag, size = 0x4, scoped, tag = 'scoped memory for tpu_custom_call.1']
    #allocation4 [shape = 's32[1]{0}', space=sflag, size = 0x4, scoped, tag = 'scoped memory for tpu_custom_call.1']
    #allocation5 [shape = 'u8[8192]{0}', space=vmem, size = 0x2000, scoped, tag = 'input window, operand 1, single buffered']
    #allocation6 [shape = 's32[1]{0}', space=sflag, size = 0x4, scoped, tag = 'scoped memory for tpu_custom_call.1']
    #allocation7 [shape = 'u8[32768]{0}', space=vmem, size = 0x8000, scoped, tag = 'input window, operand 2, single buffered']
    #allocation8 [shape = 'u8[8192]{0}', space=vmem, size = 0x2000, scoped, tag = 'output window, operand 0, single buffered']
    %9 = vsyncpa [#allocation3], 0
    %10 = vsyncpa [#allocation6], 0
    %11 = vsyncpa [#allocation4], 0
    // Predicated region
    $region2: #{tpu_custom_call.1} parent=1 // pred_check
      _
    $region3: #{tpu_custom_call.1} parent=1 // pred_check_branch
      %13 = sbr.rel (0) target = $region5
    $region4: #{tpu_custom_call.1} parent=1 // pred_region
      %s15 = ssub.s32 256, 256
      %16 = vsyncadd [#allocation3], %s15
      %s17 = sshll.u32 [#allocation2], 4
      %s18 = int_to_ptr.vmem [resolvable:$true] %s17
      %23 = dma.hbm_to_vmem [thread:$0]  %s0, 256, %s18, [#allocation3], 128, 128, 8
    $region5: #{tpu_custom_call.1} parent=1 // pred_fallthru
      _
    // Predicated region
    $region6: #{tpu_custom_call.1} parent=1 // pred_check
      _
    $region7: #{tpu_custom_call.1} parent=1 // pred_check_branch
      %25 = sbr.rel (0) target = $region9
    $region8: #{tpu_custom_call.1} parent=1 // pred_region
      %s27 = ssub.s32 256, 256
      %28 = vsyncadd [#allocation6], %s27
      %s29 = sshll.u32 [#allocation5], 4
      %s30 = int_to_ptr.vmem [resolvable:$true] %s29
      %35 = dma.hbm_to_vmem [thread:$0]  %s1, 256, %s30, [#allocation6], 128, 128, 8
    $region9: #{tpu_custom_call.1} parent=1 // pred_fallthru
      _
    // Predicated region
    $region10: #{tpu_custom_call.1} parent=1 // pred_check
      _
    $region11: #{tpu_custom_call.1} parent=1 // pred_check_branch
      %37 = sbr.rel (0) target = $region13
    $region12: #{tpu_custom_call.1} parent=1 // pred_region
      %s39 = ssub.s32 1024, 1024
      %40 = vsyncadd [#allocation6], %s39
      %s41 = sshll.u32 [#allocation7], 4
      %s42 = int_to_ptr.vmem [resolvable:$true] %s41
      %47 = dma.hbm_to_vmem [thread:$0]  %s2, 1024, %s42, [#allocation6], 128, 128, 8
    $region13: #{tpu_custom_call.1} parent=1 // pred_fallthru
      _
    // Predicated region
    $region14: #{tpu_custom_call.1} parent=1 // pred_check
      _
    $region15: #{tpu_custom_call.1} parent=1 // pred_check_branch
      %49 = sbr.rel (0) target = $region17
    $region16: #{tpu_custom_call.1} parent=1 // pred_region
      _
    $region17: #{tpu_custom_call.1} parent=1 // pred_fallthru
      _
    // Predicated region
    $region18: #{tpu_custom_call.1} parent=1 // pred_check
      _
    $region19: #{tpu_custom_call.1} parent=1 // pred_check_branch
      %51 = sbr.rel (0) target = $region21
    $region20: #{tpu_custom_call.1} parent=1 // pred_region
      %52 = dma.done [#allocation3], 256
    $region21: #{tpu_custom_call.1} parent=1 // pred_fallthru
      _
    // Predicated region
    $region22: #{tpu_custom_call.1} parent=1 // pred_check
      _
    $region23: #{tpu_custom_call.1} parent=1 // pred_check_branch
      %54 = sbr.rel (0) target = $region25
    $region24: #{tpu_custom_call.1} parent=1 // pred_region
      %55 = dma.done [#allocation6], 256
    $region25: #{tpu_custom_call.1} parent=1 // pred_fallthru
      _
    // Predicated region
    $region26: #{tpu_custom_call.1} parent=1 // pred_check
      _
    $region27: #{tpu_custom_call.1} parent=1 // pred_check_branch
      %57 = sbr.rel (0) target = $region29
    $region28: #{tpu_custom_call.1} parent=1 // pred_region
      %58 = dma.done [#allocation6], 1024
    $region29: #{tpu_custom_call.1} parent=1 // pred_fallthru
      _
    %v59 = vld [vmem:[#allocation2] sm:$0xff]
    %v60 = vld [vmem:[#allocation2 + $0x8] sm:$0xff]
    %v61 = vld [vmem:[#allocation7] sm:$0xff]
    %v62 = vld [vmem:[#allocation7 + $0x8] sm:$0xff]
    %v63 = vld [vmem:[#allocation7 + $0x10] sm:$0xff]
    %v64 = vld [vmem:[#allocation7 + $0x18] sm:$0xff]
    %v65 = vld [vmem:[%s3] sm:$0x1]
    %v67 = vlaneseq
    %v68 = vshrl.u32 %v67, 7
    %v69 = vsub.s32 0, %v68
    %v70 = vrot.slane %v65, %v69
    %vm72 = vcmask 261120
    %v74 = vsel %vm72, %v59, 0
    %v77 = vsel %vm72, %v60, 0
    %79 = vmatprep.subr.mxu0 0.0
    %80 = vmatpush1.msra.mxu0 0.0
    %81 = vmatprep.subr.mxu0 0.0
    %82 = vmatpush1.msra.mxu0 0.0
    %83 = vmatprep.subr.mxu0 0.0
    %84 = vmatpush1.msra.mxu0 0.0
    %85 = vmatprep.subr.mxu0 0.0
    %86 = vmatpush1.msra.mxu0 0.0
    %87 = vmatprep.subr.mxu0 0.0
    %88 = vmatpush1.msra.mxu0 0.0
    %89 = vmatprep.subr.mxu0 0.0
    %90 = vmatpush1.msra.mxu0 0.0
    %91 = vmatprep.subr.mxu0 0.0
    %92 = vmatpush1.msra.mxu0 0.0
    %93 = vmatprep.subr.mxu0 0.0
    %94 = vmatpush1.msra.mxu0 0.0
    %95 = vmatprep.subr.mxu0 0.0
    %96 = vmatpush1.msra.mxu0 0.0
    %97 = vmatprep.subr.mxu0 0.0
    %98 = vmatpush1.msra.mxu0 0.0
    %99 = vmatprep.subr.mxu0 0.0
    %100 = vmatpush1.msra.mxu0 0.0
    %101 = vmatprep.subr.mxu0 0.0
    %102 = vmatpush1.msra.mxu0 0.0
    %103 = vmatprep.subr.mxu0 0.0
    %104 = vmatpush1.msra.mxu0 %v64
    %105 = vmatprep.subr.mxu0 0.0
    %106 = vmatpush1.msra.mxu0 %v63
    %107 = vmatprep.subr.mxu0 0.0
    %108 = vmatpush1.msra.mxu0 %v62
    %109 = vmatprep.subr.mxu0 0.0
    %110 = vmatpush1.msra.mxu0 %v61
    %111 = vmatprep.subr.mxu0 0.0
    %112 = vmatpush2.msra.mxu0 0.0
    %113 = vmatprep.subr.mxu0 0.0
    %114 = vmatpush2.msra.mxu0 0.0
    %115 = vmatprep.subr.mxu0 0.0
    %116 = vmatpush2.msra.mxu0 0.0
    %117 = vmatprep.subr.mxu0 0.0
    %118 = vmatpush2.msra.mxu0 0.0
    %119 = vmatprep.subr.mxu0 0.0
    %120 = vmatpush2.msra.mxu0 0.0
    %121 = vmatprep.subr.mxu0 0.0
    %122 = vmatpush2.msra.mxu0 0.0
    %123 = vmatprep.subr.mxu0 0.0
    %124 = vmatpush2.msra.mxu0 0.0
    %125 = vmatprep.subr.mxu0 0.0
    %126 = vmatpush2.msra.mxu0 0.0
    %127 = vmatprep.subr.mxu0 0.0
    %128 = vmatpush2.msra.mxu0 0.0
    %129 = vmatprep.subr.mxu0 0.0
    %130 = vmatpush2.msra.mxu0 0.0
    %131 = vmatprep.subr.mxu0 0.0
    %132 = vmatpush2.msra.mxu0 0.0
    %133 = vmatprep.subr.mxu0 0.0
    %134 = vmatpush2.msra.mxu0 0.0
    %135 = vmatprep.subr.mxu0 0.0
    %136 = vmatpush2.msra.mxu0 0.0
    %137 = vmatprep.subr.mxu0 0.0
    %138 = vmatpush2.msra.mxu0 0.0
    %139 = vmatprep.subr.mxu0 0.0
    %140 = vmatpush2.msra.mxu0 0.0
    %141 = vmatprep.subr.mxu0 0.0
    %142 = vmatpush2.msra.mxu0 0.0
    %143 = vmatprep.mubr.f32.mxu0 0.0
    %144 = vmatmul.mubr.f32.gmra.mxu0 %v74
    %v145 = vpop.f32.mrf.mxu0
    %v146 = vadd.f32 %v70, %v145
    %v147 = vpop.f32.mrf.mxu0
    %148 = vmatprep.mubr.f32.mxu0 0.0
    %149 = vmatmul.mubr.f32.gmra.mxu0 %v77
    %v150 = vpop.f32.mrf.mxu0
    %v151 = vadd.f32 %v70, %v150
    %v152 = vpop.f32.mrf.mxu0
    %153 = vdwg.mxu0
    %s154 = scalar_lea.vmem [#allocation7], 32
    %v155 = vld [vmem:[%s154] sm:$0xff]
    %v156 = vld [vmem:[%s154 + $0x8] sm:$0xff]
    %v157 = vld [vmem:[%s154 + $0x10] sm:$0xff]
    %v158 = vld [vmem:[%s154 + $0x18] sm:$0xff]
    %s159 = scalar_lea.vmem %s3, 1
    %v160 = vld [vmem:[%s159] sm:$0x1]
    %v162 = vlaneseq
    %v163 = vshrl.u32 %v162, 7
    %v164 = vsub.s32 0, %v163
    %v165 = vrot.slane %v160, %v164
    %167 = vmatprep.subr.mxu0 0.0
    %168 = vmatpush1.msra.mxu0 0.0
    %169 = vmatprep.subr.mxu0 0.0
    %170 = vmatpush1.msra.mxu0 0.0
    %171 = vmatprep.subr.mxu0 0.0
    %172 = vmatpush1.msra.mxu0 0.0
    %173 = vmatprep.subr.mxu0 0.0
    %174 = vmatpush1.msra.mxu0 0.0
    %175 = vmatprep.subr.mxu0 0.0
    %176 = vmatpush1.msra.mxu0 0.0
    %177 = vmatprep.subr.mxu0 0.0
    %178 = vmatpush1.msra.mxu0 0.0
    %179 = vmatprep.subr.mxu0 0.0
    %180 = vmatpush1.msra.mxu0 0.0
    %181 = vmatprep.subr.mxu0 0.0
    %182 = vmatpush1.msra.mxu0 0.0
    %183 = vmatprep.subr.mxu0 0.0
    %184 = vmatpush1.msra.mxu0 0.0
    %185 = vmatprep.subr.mxu0 0.0
    %186 = vmatpush1.msra.mxu0 0.0
    %187 = vmatprep.subr.mxu0 0.0
    %188 = vmatpush1.msra.mxu0 0.0
    %189 = vmatprep.subr.mxu0 0.0
    %190 = vmatpush1.msra.mxu0 0.0
    %191 = vmatprep.subr.mxu0 0.0
    %192 = vmatpush1.msra.mxu0 %v158
    %193 = vmatprep.subr.mxu0 0.0
    %194 = vmatpush1.msra.mxu0 %v157
    %195 = vmatprep.subr.mxu0 0.0
    %196 = vmatpush1.msra.mxu0 %v156
    %197 = vmatprep.subr.mxu0 0.0
    %198 = vmatpush1.msra.mxu0 %v155
    %199 = vmatprep.subr.mxu0 0.0
    %200 = vmatpush2.msra.mxu0 0.0
    %201 = vmatprep.subr.mxu0 0.0
    %202 = vmatpush2.msra.mxu0 0.0
    %203 = vmatprep.subr.mxu0 0.0
    %204 = vmatpush2.msra.mxu0 0.0
    %205 = vmatprep.subr.mxu0 0.0
    %206 = vmatpush2.msra.mxu0 0.0
    %207 = vmatprep.subr.mxu0 0.0
    %208 = vmatpush2.msra.mxu0 0.0
    %209 = vmatprep.subr.mxu0 0.0
    %210 = vmatpush2.msra.mxu0 0.0
    %211 = vmatprep.subr.mxu0 0.0
    %212 = vmatpush2.msra.mxu0 0.0
    %213 = vmatprep.subr.mxu0 0.0
    %214 = vmatpush2.msra.mxu0 0.0
    %215 = vmatprep.subr.mxu0 0.0
    %216 = vmatpush2.msra.mxu0 0.0
    %217 = vmatprep.subr.mxu0 0.0
    %218 = vmatpush2.msra.mxu0 0.0
    %219 = vmatprep.subr.mxu0 0.0
    %220 = vmatpush2.msra.mxu0 0.0
    %221 = vmatprep.subr.mxu0 0.0
    %222 = vmatpush2.msra.mxu0 0.0
    %223 = vmatprep.subr.mxu0 0.0
    %224 = vmatpush2.msra.mxu0 0.0
    %225 = vmatprep.subr.mxu0 0.0
    %226 = vmatpush2.msra.mxu0 0.0
    %227 = vmatprep.subr.mxu0 0.0
    %228 = vmatpush2.msra.mxu0 0.0
    %229 = vmatprep.subr.mxu0 0.0
    %230 = vmatpush2.msra.mxu0 0.0
    %231 = vmatprep.mubr.f32.mxu0 0.0
    %232 = vmatmul.mubr.f32.gmra.mxu0 %v74
    %v233 = vpop.f32.mrf.mxu0
    %v234 = vadd.f32 %v165, %v233
    %v235 = vpop.f32.mrf.mxu0
    %236 = vmatprep.mubr.f32.mxu0 0.0
    %237 = vmatmul.mubr.f32.gmra.mxu0 %v77
    %v238 = vpop.f32.mrf.mxu0
    %v239 = vadd.f32 %v165, %v238
    %v240 = vpop.f32.mrf.mxu0
    %241 = vdwg.mxu0
    %v242 = vxor.u32 %v146, 2147483648
    %v243 = vxor.u32 %v151, 2147483648
    %v244 = vmul.f32 %v242, 1.442695
    %v245 = vpow.pop %v244
    %v246 = vmul.f32 %v243, 1.442695
    %v247 = vpow.pop %v246
    %v248 = vadd.f32 %v245, 1.0
    %v249 = vadd.f32 %v247, 1.0
    %v250 = vrcp.pop %v248
    %v251 = vmul.f32 1.0, %v250
    %v252 = vrcp.pop %v249
    %v253 = vmul.f32 1.0, %v252
    %v254 = vmul.f32 %v251, %v234
    %v255 = vmul.f32 %v253, %v239
    %v256 = vld [vmem:[#allocation5] sm:$0xff]
    %v257 = vld [vmem:[#allocation5 + $0x8] sm:$0xff]
    %v258 = vadd.f32 %v254, %v256
    %v259 = vadd.f32 %v255, %v257
    %v260 = vsel %vm72, %v258, 0.0
    %261 = vadd.xlane.f32.xlu0 %v260
    %v262 = vpop.xlane.xlu0 %261
    %v263 = vsel %vm72, %v259, 0.0
    %264 = vadd.xlane.f32.xlu0 %v263
    %v265 = vpop.xlane.xlu0 %264
    %v266 = vrcp.pop 32.0
    %v267 = vmul.f32 %v262, %v266
    %v268 = vmul.f32 %v265, %v266
    %v269 = vsub.f32 %v258, %v267
    %v270 = vsub.f32 %v259, %v268
    %v271 = vmul.f32 %v269, %v269
    %v272 = vmul.f32 %v270, %v270
    %v273 = vsel %vm72, %v271, 0.0
    %274 = vadd.xlane.f32.xlu0 %v273
    %v275 = vpop.xlane.xlu0 %274
    %v276 = vsel %vm72, %v272, 0.0
    %277 = vadd.xlane.f32.xlu0 %v276
    %v278 = vpop.xlane.xlu0 %277
    %v279 = vmul.f32 %v275, %v266
    %v280 = vmul.f32 %v278, %v266
    %v281 = vadd.f32 %v279, 1e-05
    %v282 = vadd.f32 %v280, 1e-05
    %v283 = vrsqrt.pop %v281
    %v284 = vrsqrt.pop %v282
    %v285 = vmul.f32 %v269, %v283
    %v286 = vmul.f32 %v270, %v284
    %s287 = scalar_lea.vmem %s3, 2
    %v288 = vld [vmem:[%s287] sm:$0x1]
    %v290 = vlaneseq
    %v291 = vshrl.u32 %v290, 7
    %v292 = vsub.s32 0, %v291
    %v293 = vrot.slane %v288, %v292
    %v295 = vmul.f32 %v285, %v293
    %v296 = vmul.f32 %v286, %v293
    %s297 = scalar_lea.vmem %s3, 3
    %v298 = vld [vmem:[%s297] sm:$0x1]
    %v300 = vlaneseq
    %v301 = vshrl.u32 %v300, 7
    %v302 = vsub.s32 0, %v301
    %v303 = vrot.slane %v298, %v302
    %v305 = vadd.f32 %v295, %v303
    %v306 = vadd.f32 %v296, %v303
    %307 = vst.msk [vmem:[#allocation8] sm:$0xff] %vm72, %v305
    %308 = vst.msk [vmem:[#allocation8 + $0x8] sm:$0xff] %vm72, %v306
    // Predicated region
    $region30: #{tpu_custom_call.1} parent=1 // pred_check
      _
    $region31: #{tpu_custom_call.1} parent=1 // pred_check_branch
      %310 = sbr.rel (0) target = $region33
    $region32: #{tpu_custom_call.1} parent=1 // pred_region
      %s312 = ssub.s32 256, 256
      %313 = vsyncadd [#allocation4], %s312
      %s314 = sshll.u32 [#allocation8], 4
      %s315 = int_to_ptr.vmem [resolvable:$true] %s314
      %320 = dma.vmem_to_hbm [thread:$0]  %s315, 256, %s4, [#allocation4], 128, 128, 8
    $region33: #{tpu_custom_call.1} parent=1 // pred_fallthru
      _
    // Predicated region
    $region34: #{tpu_custom_call.1} parent=1 // pred_check
      _
    $region35: #{tpu_custom_call.1} parent=1 // pred_check_branch
      %322 = sbr.rel (0) target = $region37
    $region36: #{tpu_custom_call.1} parent=1 // pred_region
      %323 = dma.done [#allocation4], 256
    $region37: #{tpu_custom_call.1} parent=1 // pred_fallthru
      _
    %324 = vsyncpa [#allocation3], 1
    %325 = vsyncpa [#allocation6], 1
    %326 = vsyncpa [#allocation4], 1

// kernel: tpu_custom_call.1
$region0: #{tpu_custom_call.1}
  #allocation0 [shape = 'u32[]', space=smem, size = 0x4, offset = 0x4, fixed_abs, tag = 'smem constant byte address 0x4 - core index']
  #allocation1 [shape = 'u32[144,128]{1,0:T(1,128)}', space=vmem, size = 0x12000, scoped, tag = 'internal scratch']
  %s0 = inlined_call_operand.hbm [shape: f32[16,32], index: 0, kind: input, shape index: {}]
  %s1 = inlined_call_operand.hbm [shape: f32[16,32], index: 1, kind: input, shape index: {}]
  %s2 = inlined_call_operand.hbm [shape: f32[2,32,32], index: 2, kind: input, shape index: {}]
  %s3 = inlined_call_operand.vmem [shape: f32[4,1,32], index: 3, kind: input, shape index: {}]
  %s4 = inlined_call_operand.hbm [shape: f32[16,32], index: 4, kind: output, shape index: {}]
  %s5 = sld [smem:[#allocation0]]
  $region38: #{tpu_custom_call.1} parent=0
    _
  %s7 = ssub.s32 1, %s5
  %s8 = scalar_select 0, %s7, %s5
  $region1: #{tpu_custom_call.1} parent=0
    #allocation2 [shape = 'u8[8192]{0}', space=vmem, size = 0x2000, scoped, tag = 'input window, operand 0, single buffered']
    #allocation3 [shape = 's32[1]{0}', space=sflag, size = 0x4, scoped, tag = 'scoped memory for tpu_custom_call.1']
    #allocation4 [shape = 's32[1]{0}', space=sflag, size = 0x4, scoped, tag = 'scoped memory for tpu_custom_call.1']
    #allocation5 [shape = 'u8[8192]{0}', space=vmem, size = 0x2000, scoped, tag = 'input window, operand 1, single buffered']
    #allocation6 [shape = 's32[1]{0}', space=sflag, size = 0x4, scoped, tag = 'scoped memory for tpu_custom_call.1']
    #allocation7 [shape = 'u8[32768]{0}', space=vmem, size = 0x8000, scoped, tag = 'input window, operand 2, single buffered']
    #allocation8 [shape = 'u8[8192]{0}', space=vmem, size = 0x2000, scoped, tag = 'output window, operand 0, single buffered']
    %9 = vsyncpa [#allocation3], 0
    %10 = vsyncpa [#allocation6], 0
    %11 = vsyncpa [#allocation4], 0
    // Predicated region
    $region2: #{tpu_custom_call.1} parent=1 // pred_check
      _
    $region3: #{tpu_custom_call.1} parent=1 // pred_check_branch
      %13 = sbr.rel (0) target = $region5
    $region4: #{tpu_custom_call.1} parent=1 // pred_region
      %s15 = ssub.s32 256, 256
      %16 = vsyncadd [#allocation3], %s15
      %s17 = sshll.u32 [#allocation2], 4
      %s18 = int_to_ptr.vmem [resolvable:$true] %s17
      %23 = dma.hbm_to_vmem [thread:$0]  %s0, 256, %s18, [#allocation3], 128, 128, 8
    $region5: #{tpu_custom_call.1} parent=1 // pred_fallthru
      _
    // Predicated region
    $region6: #{tpu_custom_call.1} parent=1 // pred_check
      _
    $region7: #{tpu_custom_call.1} parent=1 // pred_check_branch
      %25 = sbr.rel (0) target = $region9
    $region8: #{tpu_custom_call.1} parent=1 // pred_region
      %s27 = ssub.s32 256, 256
      %28 = vsyncadd [#allocation6], %s27
      %s29 = sshll.u32 [#allocation5], 4
      %s30 = int_to_ptr.vmem [resolvable:$true] %s29
      %35 = dma.hbm_to_vmem [thread:$0]  %s1, 256, %s30, [#allocation6], 128, 128, 8
    $region9: #{tpu_custom_call.1} parent=1 // pred_fallthru
      _
    // Predicated region
    $region10: #{tpu_custom_call.1} parent=1 // pred_check
      _
    $region11: #{tpu_custom_call.1} parent=1 // pred_check_branch
      %37 = sbr.rel (0) target = $region13
    $region12: #{tpu_custom_call.1} parent=1 // pred_region
      %s39 = ssub.s32 1024, 1024
      %40 = vsyncadd [#allocation6], %s39
      %s41 = sshll.u32 [#allocation7], 4
      %s42 = int_to_ptr.vmem [resolvable:$true] %s41
      %47 = dma.hbm_to_vmem [thread:$0]  %s2, 1024, %s42, [#allocation6], 128, 128, 8
    $region13: #{tpu_custom_call.1} parent=1 // pred_fallthru
      _
    // Predicated region
    $region14: #{tpu_custom_call.1} parent=1 // pred_check
      _
    $region15: #{tpu_custom_call.1} parent=1 // pred_check_branch
      %49 = sbr.rel (0) target = $region17
    $region16: #{tpu_custom_call.1} parent=1 // pred_region
      _
    $region17: #{tpu_custom_call.1} parent=1 // pred_fallthru
      _
    // Predicated region
    $region18: #{tpu_custom_call.1} parent=1 // pred_check
      _
    $region19: #{tpu_custom_call.1} parent=1 // pred_check_branch
      %51 = sbr.rel (0) target = $region21
    $region20: #{tpu_custom_call.1} parent=1 // pred_region
      %52 = dma.done [#allocation3], 256
    $region21: #{tpu_custom_call.1} parent=1 // pred_fallthru
      _
    // Predicated region
    $region22: #{tpu_custom_call.1} parent=1 // pred_check
      _
    $region23: #{tpu_custom_call.1} parent=1 // pred_check_branch
      %54 = sbr.rel (0) target = $region25
    $region24: #{tpu_custom_call.1} parent=1 // pred_region
      %55 = dma.done [#allocation6], 256
    $region25: #{tpu_custom_call.1} parent=1 // pred_fallthru
      _
    // Predicated region
    $region26: #{tpu_custom_call.1} parent=1 // pred_check
      _
    $region27: #{tpu_custom_call.1} parent=1 // pred_check_branch
      %57 = sbr.rel (0) target = $region29
    $region28: #{tpu_custom_call.1} parent=1 // pred_region
      %58 = dma.done [#allocation6], 1024
    $region29: #{tpu_custom_call.1} parent=1 // pred_fallthru
      _
    %v59 = vld [vmem:[#allocation2] sm:$0xff]
    %v60 = vld [vmem:[#allocation2 + $0x8] sm:$0xff]
    %v61 = vld [vmem:[#allocation7] sm:$0xff]
    %v62 = vld [vmem:[#allocation7 + $0x8] sm:$0xff]
    %v63 = vld [vmem:[#allocation7 + $0x10] sm:$0xff]
    %v64 = vld [vmem:[#allocation7 + $0x18] sm:$0xff]
    %v65 = vld [vmem:[%s3] sm:$0x1]
    %v67 = vlaneseq
    %v68 = vshrl.u32 %v67, 7
    %v69 = vsub.s32 0, %v68
    %v70 = vrot.slane %v65, %v69
    %vm72 = vcmask 261120
    %v74 = vsel %vm72, %v59, 0
    %v77 = vsel %vm72, %v60, 0
    %79 = vmatprep.subr.mxu0 0.0
    %80 = vmatpush1.msra.mxu0 0.0
    %81 = vmatprep.subr.mxu0 0.0
    %82 = vmatpush1.msra.mxu0 0.0
    %83 = vmatprep.subr.mxu0 0.0
    %84 = vmatpush1.msra.mxu0 0.0
    %85 = vmatprep.subr.mxu0 0.0
    %86 = vmatpush1.msra.mxu0 0.0
    %87 = vmatprep.subr.mxu0 0.0
    %88 = vmatpush1.msra.mxu0 0.0
    %89 = vmatprep.subr.mxu0 0.0
    %90 = vmatpush1.msra.mxu0 0.0
    %91 = vmatprep.subr.mxu0 0.0
    %92 = vmatpush1.msra.mxu0 0.0
    %93 = vmatprep.subr.mxu0 0.0
    %94 = vmatpush1.msra.mxu0 0.0
    %95 = vmatprep.subr.mxu0 0.0
    %96 = vmatpush1.msra.mxu0 0.0
    %97 = vmatprep.subr.mxu0 0.0
    %98 = vmatpush1.msra.mxu0 0.0
    %99 = vmatprep.subr.mxu0 0.0
    %100 = vmatpush1.msra.mxu0 0.0
    %101 = vmatprep.subr.mxu0 0.0
    %102 = vmatpush1.msra.mxu0 0.0
    %103 = vmatprep.subr.mxu0 0.0
    %104 = vmatpush1.msra.mxu0 %v64
    %105 = vmatprep.subr.mxu0 0.0
    %106 = vmatpush1.msra.mxu0 %v63
    %107 = vmatprep.subr.mxu0 0.0
    %108 = vmatpush1.msra.mxu0 %v62
    %109 = vmatprep.subr.mxu0 0.0
    %110 = vmatpush1.msra.mxu0 %v61
    %111 = vmatprep.subr.mxu0 0.0
    %112 = vmatpush2.msra.mxu0 0.0
    %113 = vmatprep.subr.mxu0 0.0
    %114 = vmatpush2.msra.mxu0 0.0
    %115 = vmatprep.subr.mxu0 0.0
    %116 = vmatpush2.msra.mxu0 0.0
    %117 = vmatprep.subr.mxu0 0.0
    %118 = vmatpush2.msra.mxu0 0.0
    %119 = vmatprep.subr.mxu0 0.0
    %120 = vmatpush2.msra.mxu0 0.0
    %121 = vmatprep.subr.mxu0 0.0
    %122 = vmatpush2.msra.mxu0 0.0
    %123 = vmatprep.subr.mxu0 0.0
    %124 = vmatpush2.msra.mxu0 0.0
    %125 = vmatprep.subr.mxu0 0.0
    %126 = vmatpush2.msra.mxu0 0.0
    %127 = vmatprep.subr.mxu0 0.0
    %128 = vmatpush2.msra.mxu0 0.0
    %129 = vmatprep.subr.mxu0 0.0
    %130 = vmatpush2.msra.mxu0 0.0
    %131 = vmatprep.subr.mxu0 0.0
    %132 = vmatpush2.msra.mxu0 0.0
    %133 = vmatprep.subr.mxu0 0.0
    %134 = vmatpush2.msra.mxu0 0.0
    %135 = vmatprep.subr.mxu0 0.0
    %136 = vmatpush2.msra.mxu0 0.0
    %137 = vmatprep.subr.mxu0 0.0
    %138 = vmatpush2.msra.mxu0 0.0
    %139 = vmatprep.subr.mxu0 0.0
    %140 = vmatpush2.msra.mxu0 0.0
    %141 = vmatprep.subr.mxu0 0.0
    %142 = vmatpush2.msra.mxu0 0.0
    %143 = vmatprep.mubr.f32.mxu0 0.0
    %144 = vmatmul.mubr.f32.gmra.mxu0 %v74
    %v145 = vpop.f32.mrf.mxu0
    %v146 = vadd.f32 %v70, %v145
    %v147 = vpop.f32.mrf.mxu0
    %148 = vmatprep.mubr.f32.mxu0 0.0
    %149 = vmatmul.mubr.f32.gmra.mxu0 %v77
    %v150 = vpop.f32.mrf.mxu0
    %v151 = vadd.f32 %v70, %v150
    %v152 = vpop.f32.mrf.mxu0
    %153 = vdwg.mxu0
    %s154 = scalar_lea.vmem [#allocation7], 32
    %v155 = vld [vmem:[%s154] sm:$0xff]
    %v156 = vld [vmem:[%s154 + $0x8] sm:$0xff]
    %v157 = vld [vmem:[%s154 + $0x10] sm:$0xff]
    %v158 = vld [vmem:[%s154 + $0x18] sm:$0xff]
    %s159 = scalar_lea.vmem %s3, 1
    %v160 = vld [vmem:[%s159] sm:$0x1]
    %v162 = vlaneseq
    %v163 = vshrl.u32 %v162, 7
    %v164 = vsub.s32 0, %v163
    %v165 = vrot.slane %v160, %v164
    %167 = vmatprep.subr.mxu0 0.0
    %168 = vmatpush1.msra.mxu0 0.0
    %169 = vmatprep.subr.mxu0 0.0
    %170 = vmatpush1.msra.mxu0 0.0
    %171 = vmatprep.subr.mxu0 0.0
    %172 = vmatpush1.msra.mxu0 0.0
    %173 = vmatprep.subr.mxu0 0.0
    %174 = vmatpush1.msra.mxu0 0.0
    %175 = vmatprep.subr.mxu0 0.0
    %176 = vmatpush1.msra.mxu0 0.0
    %177 = vmatprep.subr.mxu0 0.0
    %178 = vmatpush1.msra.mxu0 0.0
    %179 = vmatprep.subr.mxu0 0.0
    %180 = vmatpush1.msra.mxu0 0.0
    %181 = vmatprep.subr.mxu0 0.0
    %182 = vmatpush1.msra.mxu0 0.0
    %183 = vmatprep.subr.mxu0 0.0
    %184 = vmatpush1.msra.mxu0 0.0
    %185 = vmatprep.subr.mxu0 0.0
    %186 = vmatpush1.msra.mxu0 0.0
    %187 = vmatprep.subr.mxu0 0.0
    %188 = vmatpush1.msra.mxu0 0.0
    %189 = vmatprep.subr.mxu0 0.0
    %190 = vmatpush1.msra.mxu0 0.0
    %191 = vmatprep.subr.mxu0 0.0
    %192 = vmatpush1.msra.mxu0 %v158
    %193 = vmatprep.subr.mxu0 0.0
    %194 = vmatpush1.msra.mxu0 %v157
    %195 = vmatprep.subr.mxu0 0.0
    %196 = vmatpush1.msra.mxu0 %v156
    %197 = vmatprep.subr.mxu0 0.0
    %198 = vmatpush1.msra.mxu0 %v155
    %199 = vmatprep.subr.mxu0 0.0
    %200 = vmatpush2.msra.mxu0 0.0
    %201 = vmatprep.subr.mxu0 0.0
    %202 = vmatpush2.msra.mxu0 0.0
    %203 = vmatprep.subr.mxu0 0.0
    %204 = vmatpush2.msra.mxu0 0.0
    %205 = vmatprep.subr.mxu0 0.0
    %206 = vmatpush2.msra.mxu0 0.0
    %207 = vmatprep.subr.mxu0 0.0
    %208 = vmatpush2.msra.mxu0 0.0
    %209 = vmatprep.subr.mxu0 0.0
    %210 = vmatpush2.msra.mxu0 0.0
    %211 = vmatprep.subr.mxu0 0.0
    %212 = vmatpush2.msra.mxu0 0.0
    %213 = vmatprep.subr.mxu0 0.0
    %214 = vmatpush2.msra.mxu0 0.0
    %215 = vmatprep.subr.mxu0 0.0
    %216 = vmatpush2.msra.mxu0 0.0
    %217 = vmatprep.subr.mxu0 0.0
    %218 = vmatpush2.msra.mxu0 0.0
    %219 = vmatprep.subr.mxu0 0.0
    %220 = vmatpush2.msra.mxu0 0.0
    %221 = vmatprep.subr.mxu0 0.0
    %222 = vmatpush2.msra.mxu0 0.0
    %223 = vmatprep.subr.mxu0 0.0
    %224 = vmatpush2.msra.mxu0 0.0
    %225 = vmatprep.subr.mxu0 0.0
    %226 = vmatpush2.msra.mxu0 0.0
    %227 = vmatprep.subr.mxu0 0.0
    %228 = vmatpush2.msra.mxu0 0.0
    %229 = vmatprep.subr.mxu0 0.0
    %230 = vmatpush2.msra.mxu0 0.0
    %231 = vmatprep.mubr.f32.mxu0 0.0
    %232 = vmatmul.mubr.f32.gmra.mxu0 %v74
    %v233 = vpop.f32.mrf.mxu0
    %v234 = vadd.f32 %v165, %v233
    %v235 = vpop.f32.mrf.mxu0
    %236 = vmatprep.mubr.f32.mxu0 0.0
    %237 = vmatmul.mubr.f32.gmra.mxu0 %v77
    %v238 = vpop.f32.mrf.mxu0
    %v239 = vadd.f32 %v165, %v238
    %v240 = vpop.f32.mrf.mxu0
    %241 = vdwg.mxu0
    %v242 = vxor.u32 %v146, 2147483648
    %v243 = vxor.u32 %v151, 2147483648
    %v244 = vmul.f32 %v242, 1.442695
    %v245 = vpow.pop %v244
    %v246 = vmul.f32 %v243, 1.442695
    %v247 = vpow.pop %v246
    %v248 = vadd.f32 %v245, 1.0
    %v249 = vadd.f32 %v247, 1.0
    %v250 = vrcp.pop %v248
    %v251 = vmul.f32 1.0, %v250
    %v252 = vrcp.pop %v249
    %v253 = vmul.f32 1.0, %v252
    %v254 = vmul.f32 %v251, %v234
    %v255 = vmul.f32 %v253, %v239
    %v256 = vld [vmem:[#allocation5] sm:$0xff]
    %v257 = vld [vmem:[#allocation5 + $0x8] sm:$0xff]
    %v258 = vadd.f32 %v254, %v256
    %v259 = vadd.f32 %v255, %v257
    %v260 = vsel %vm72, %v258, 0.0
    %261 = vadd.xlane.f32.xlu0 %v260
    %v262 = vpop.xlane.xlu0 %261
    %v263 = vsel %vm72, %v259, 0.0
    %264 = vadd.xlane.f32.xlu0 %v263
    %v265 = vpop.xlane.xlu0 %264
    %v266 = vrcp.pop 32.0
    %v267 = vmul.f32 %v262, %v266
    %v268 = vmul.f32 %v265, %v266
    %v269 = vsub.f32 %v258, %v267
    %v270 = vsub.f32 %v259, %v268
    %v271 = vmul.f32 %v269, %v269
    %v272 = vmul.f32 %v270, %v270
    %v273 = vsel %vm72, %v271, 0.0
    %274 = vadd.xlane.f32.xlu0 %v273
    %v275 = vpop.xlane.xlu0 %274
    %v276 = vsel %vm72, %v272, 0.0
    %277 = vadd.xlane.f32.xlu0 %v276
    %v278 = vpop.xlane.xlu0 %277
    %v279 = vmul.f32 %v275, %v266
    %v280 = vmul.f32 %v278, %v266
    %v281 = vadd.f32 %v279, 1e-05
    %v282 = vadd.f32 %v280, 1e-05
    %v283 = vrsqrt.pop %v281
    %v284 = vrsqrt.pop %v282
    %v285 = vmul.f32 %v269, %v283
    %v286 = vmul.f32 %v270, %v284
    %s287 = scalar_lea.vmem %s3, 2
    %v288 = vld [vmem:[%s287] sm:$0x1]
    %v290 = vlaneseq
    %v291 = vshrl.u32 %v290, 7
    %v292 = vsub.s32 0, %v291
    %v293 = vrot.slane %v288, %v292
    %v295 = vmul.f32 %v285, %v293
    %v296 = vmul.f32 %v286, %v293
    %s297 = scalar_lea.vmem %s3, 3
    %v298 = vld [vmem:[%s297] sm:$0x1]
    %v300 = vlaneseq
    %v301 = vshrl.u32 %v300, 7
    %v302 = vsub.s32 0, %v301
    %v303 = vrot.slane %v298, %v302
    %v305 = vadd.f32 %v295, %v303
    %v306 = vadd.f32 %v296, %v303
    %307 = vst.msk [vmem:[#allocation8] sm:$0xff] %vm72, %v305
    %308 = vst.msk [vmem:[#allocation8 + $0x8] sm:$0xff] %vm72, %v306
    // Predicated region
    $region30: #{tpu_custom_call.1} parent=1 // pred_check
      _
    $region31: #{tpu_custom_call.1} parent=1 // pred_check_branch
      %310 = sbr.rel (0) target = $region33
    $region32: #{tpu_custom_call.1} parent=1 // pred_region
      %s312 = ssub.s32 256, 256
      %313 = vsyncadd [#allocation4], %s312
      %s314 = sshll.u32 [#allocation8], 4
      %s315 = int_to_ptr.vmem [resolvable:$true] %s314
      %320 = dma.vmem_to_hbm [thread:$0]  %s315, 256, %s4, [#allocation4], 128, 128, 8
    $region33: #{tpu_custom_call.1} parent=1 // pred_fallthru
      _
    // Predicated region
    $region34: #{tpu_custom_call.1} parent=1 // pred_check
      _
    $region35: #{tpu_custom_call.1} parent=1 // pred_check_branch
      %322 = sbr.rel (0) target = $region37
    $region36: #{tpu_custom_call.1} parent=1 // pred_region
      %323 = dma.done [#allocation4], 256
    $region37: #{tpu_custom_call.1} parent=1 // pred_fallthru
      _
    %324 = vsyncpa [#allocation3], 1
    %325 = vsyncpa [#allocation6], 1
    %326 = vsyncpa [#allocation4], 1

</llo_original>
